<compile_context>
chip_gen: v7x
topology: tpu7x:2x2x1
jax: 0.10.0
libtpu: 0.0.40
codegen_flags: <defaults>
</compile_context>

<pallas_src>
import math

import jax
import jax.numpy as jnp
from jax.experimental import pallas as pl
from jax.experimental.pallas import tpu as pltpu

_LANE = 128
_SUBLANE = 8


def _round_up(v, m):
    return ((v + m - 1) // m) * m


def _vmem_budget_bytes():
    """~3/4 of per-core VMEM: ~48 MiB on v7x (64 MiB/TC), ~96 MiB on v5e/v6e."""
    try:
        cap = int(pltpu.get_tpu_info().vmem_capacity_bytes)
    except Exception:
        cap = 64 * 1024 * 1024  # conservative (v7x-sized) fallback
    return cap * 3 // 4


def _divisor_tiles(n, align, cap):
    """Divisors of n that are multiples of `align` (plus n itself), descending."""
    cands = {n}
    d = align
    while d <= min(n, cap):
        if n % d == 0:
            cands.add(d)
        d += align
    return sorted(cands, reverse=True)


# ----------------------------------------------------------------------------
# Kernels
# ----------------------------------------------------------------------------
def _sage_fused_kernel(x_ref, adj_ref, wt_ref, out_ref):
    """Collapsed reduction: out rows = (x_rows + adj_strip @ x_panel) @ W^T.

    x_ref:   (1, N, C_in)       per-batch x panel, VMEM-resident across i
    adj_ref: (1, T_i, N)        adjacency row strip (dominant HBM stream)
    wt_ref:  (C_in, C_out_pad)  W^T, resident across the whole grid
    out_ref: (1, T_i, C_out_pad)
    """
    i = pl.program_id(1)
    t_i = adj_ref.shape[1]

    x_panel = x_ref[0].astype(jnp.float32)                     # (N, C_in)
    h = jnp.dot(adj_ref[0].astype(jnp.float32), x_panel,
                preferred_element_type=jnp.float32)            # (T_i, C_in)

    # Self term: rows of this row-tile, sliced from the resident panel.
    row0 = pl.multiple_of(i * t_i, t_i)
    h = h + x_ref[0, pl.ds(row0, t_i), :].astype(jnp.float32)

    # Single f32 projection + lane-dense store.
    out_ref[0] = jnp.dot(h, wt_ref[...].astype(jnp.float32),
                         preferred_element_type=jnp.float32).astype(out_ref.dtype)


def _sage_ktiled_kernel(x_ref, adj_ref, wt_ref, out_ref, acc_ref):
    """K-tiled fallback: rectangular adj tiles, f32 accumulator, resident x.

    x_ref:   (1, N, C_in)       per-batch x panel, VMEM-resident
    adj_ref: (1, T_i, T_k)      adjacency tile
    wt_ref:  (C_in, C_out_pad)
    out_ref: (1, T_i, C_out_pad) resident across k
    acc_ref: (T_i, C_in) f32
    """
    i = pl.program_id(1)
    k = pl.program_id(2)
    t_i = adj_ref.shape[1]
    t_k = adj_ref.shape[2]

    @pl.when(k == 0)
    def _init():  # self term folded into the accumulator init
        row0 = pl.multiple_of(i * t_i, t_i)
        acc_ref[...] = x_ref[0, pl.ds(row0, t_i), :].astype(jnp.float32)

    col0 = pl.multiple_of(k * t_k, t_k)
    x_chunk = x_ref[0, pl.ds(col0, t_k), :].astype(jnp.float32)
    acc_ref[...] += jnp.dot(adj_ref[0].astype(jnp.float32), x_chunk,
                            preferred_element_type=jnp.float32)

    @pl.when(k == pl.num_programs(2) - 1)
    def _finalize():
        out_ref[0] = jnp.dot(acc_ref[...], wt_ref[...].astype(jnp.float32),
                             preferred_element_type=jnp.float32
                             ).astype(out_ref.dtype)


# ----------------------------------------------------------------------------
# Wrapper
# ----------------------------------------------------------------------------
def sage_convolution(x, adj, weight, *, adj_dtype=jnp.bfloat16,
                     row_tile=None, k_tile=None, force_k_tiled=False,
                     max_row_tile=1024, max_k_tile=4096):
    """x: (B*N, C_in), adj: (B, N, N), weight: (C_out, C_in) -> (B, N, C_out).

    adj_dtype: storage/streaming dtype for the adjacency (dominant HBM stream);
      None keeps the input dtype.  The adj @ x contraction and the W^T
      projection always accumulate in f32, so only adj itself is quantized.
      TODO(synk): int8 (v5e) / fp8 (v7x) adj compression with a folded scale.
    """
    out_dtype = x.dtype
    B, N, _ = adj.shape
    C_in = x.shape[-1]
    C_out = weight.shape[0]

    xb = x.reshape(B, N, C_in)        # matches x.view(-1, N, C_in)
    wt = weight.T                     # (C_in, C_out)

    if adj_dtype is not None and adj.dtype != jnp.dtype(adj_dtype):
        adj = adj.astype(adj_dtype)

    # Lane-dense output stores: pad out-channels to a multiple of 128.
    c_out_pad = _round_up(C_out, _LANE)
    if c_out_pad != C_out:
        wt = jnp.pad(wt, ((0, 0), (0, c_out_pad - C_out)))

    # Zero-pad ragged N to a sublane multiple (padded rows/cols are zeros, so
    # they contribute nothing; padding is sliced off at the end).
    n_pad = _round_up(N, _SUBLANE)
    if n_pad != N:
        xb = jnp.pad(xb, ((0, 0), (0, n_pad - N), (0, 0)))
        adj = jnp.pad(adj, ((0, 0), (0, n_pad - N), (0, n_pad - N)))

    adj_b = jnp.dtype(adj.dtype).itemsize
    x_b = jnp.dtype(xb.dtype).itemsize
    w_b = jnp.dtype(wt.dtype).itemsize
    o_b = jnp.dtype(out_dtype).itemsize

    budget = _vmem_budget_bytes()
    # Resident x panel + resident W^T (count x2 for the pipeline's buffering).
    fixed = 2 * n_pad * C_in * x_b + 2 * C_in * c_out_pad * w_b
    if fixed > budget:
        # TODO(synk): stream x per K tile (and tile C_out / keep W in bf16) for
        #             N / channel counts whose resident panels exceed VMEM.
        raise ValueError("resident x panel / weight exceed the VMEM budget")

    def fits_fused(t_i):
        need = fixed + 2 * t_i * n_pad * adj_b + 2 * t_i * c_out_pad * o_b
        return need <= budget

    def fits_ktiled(t_i, t_k):
        need = (fixed + 2 * t_i * t_k * adj_b + 2 * t_i * c_out_pad * o_b
                + t_i * C_in * 4)
        return need <= budget

    vmem_limit = int(budget)

    # ---- preferred path: reduction axis collapsed (one wide matmul / step) --
    t_i_fused = None
    if not force_k_tiled:
        if row_tile is not None:
            if n_pad % row_tile == 0 and fits_fused(row_tile):
                t_i_fused = row_tile
        else:
            fitting = [t for t in _divisor_tiles(n_pad, _SUBLANE, max_row_tile)
                       if fits_fused(t)]
            if fitting:
                # Mild megacore-balance preference: keep >=2 parallel steps.
                balanced = [t for t in fitting if B * (n_pad // t) >= 2]
                t_i_fused = balanced[0] if balanced else fitting[0]

    if t_i_fused is not None:
        t_i = t_i_fused
        out = pl.pallas_call(
            _sage_fused_kernel,
            out_shape=jax.ShapeDtypeStruct((B, n_pad, c_out_pad), out_dtype),
            grid_spec=pltpu.PrefetchScalarGridSpec(
                num_scalar_prefetch=0,
                grid=(B, n_pad // t_i),
                in_specs=[
                    # x panel: constant block index per batch -> resident.
                    pl.BlockSpec((1, n_pad, C_in), lambda b, i: (b, 0, 0)),
                    # adjacency row strip (the stream that sets the roofline).
                    pl.BlockSpec((1, t_i, n_pad), lambda b, i: (b, i, 0)),
                    # W^T: constant block index -> DMA'd once for the grid.
                    pl.BlockSpec((C_in, c_out_pad), lambda b, i: (0, 0)),
                ],
                out_specs=pl.BlockSpec((1, t_i, c_out_pad),
                                       lambda b, i: (b, i, 0)),
            ),
            compiler_params=pltpu.CompilerParams(
                dimension_semantics=("parallel", "parallel"),
                vmem_limit_bytes=vmem_limit),
        )(xb, adj, wt)
    else:
        # ---- fallback: K-tiled reduction with wide rectangular adj tiles ----
        if row_tile is not None and k_tile is not None:
            t_i, t_k = row_tile, k_tile
        else:
            t_i = t_k = None
            for cand_k in _divisor_tiles(n_pad, _LANE, max_k_tile):
                for cand_i in _divisor_tiles(n_pad, _SUBLANE, max_row_tile):
                    if fits_ktiled(cand_i, cand_k):
                        t_i, t_k = cand_i, cand_k
                        break
                if t_i is not None:
                    break
            if t_i is None:
                raise ValueError("no K-tiled configuration fits the VMEM budget")
        assert n_pad % t_i == 0 and n_pad % t_k == 0
        assert t_i % _SUBLANE == 0 or t_i == n_pad
        assert t_k % _LANE == 0 or t_k == n_pad

        out = pl.pallas_call(
            _sage_ktiled_kernel,
            out_shape=jax.ShapeDtypeStruct((B, n_pad, c_out_pad), out_dtype),
            grid_spec=pltpu.PrefetchScalarGridSpec(
                num_scalar_prefetch=0,
                grid=(B, n_pad // t_i, n_pad // t_k),
                in_specs=[
                    pl.BlockSpec((1, n_pad, C_in), lambda b, i, k: (b, 0, 0)),
                    pl.BlockSpec((1, t_i, t_k), lambda b, i, k: (b, i, k)),
                    pl.BlockSpec((C_in, c_out_pad), lambda b, i, k: (0, 0)),
                ],
                out_specs=pl.BlockSpec((1, t_i, c_out_pad),
                                       lambda b, i, k: (b, i, 0)),
                scratch_shapes=[pltpu.VMEM((t_i, C_in), jnp.float32)],
            ),
            compiler_params=pltpu.CompilerParams(
                dimension_semantics=("parallel", "parallel", "arbitrary"),
                vmem_limit_bytes=vmem_limit),
        )(xb, adj, wt)

    if n_pad != N or c_out_pad != C_out:
        out = out[:, :N, :C_out]
    return out


def _reference(x, adj, weight):
    """Mirrors the PyTorch dense branch: h1 = lin(x); h2 = lin(adj @ x)."""
    B, N, _ = adj.shape
    C_in = x.shape[-1]
    h1 = (x @ weight.T).reshape(B, N, -1)
    h2 = adj @ x.reshape(B, N, C_in)
    h2 = (h2.reshape(-1, C_in) @ weight.T).reshape(B, N, -1)
    return h1 + h2


if __name__ == "__main__":
    # --- primary shapes (dense adjacency branch of the module) --------------
    B, N, C_in, C_out = 2, 16, 32, 32
    key = jax.random.PRNGKey(0)
    kx, ka, kw = jax.random.split(key, 3)

    # torch Linear.reset_parameters-style init: U(-1/sqrt(C_in), 1/sqrt(C_in)).
    bound = 1.0 / math.sqrt(C_in)
    weight = jax.random.uniform(kw, (C_out, C_in), jnp.float32, -bound, bound)
    x = jax.random.normal(kx, (B * N, C_in), jnp.float32)
    adj = jax.random.normal(ka, (B, N, N), jnp.float32)
    ref = _reference(x, adj, weight)

    # Exact f32 adjacency (collapsed-reduction path).
    out_f32 = jax.block_until_ready(
        sage_convolution(x, adj, weight, adj_dtype=None))
    assert out_f32.shape == (B, N, C_out)
    assert jnp.allclose(out_f32, ref, atol=1e-4, rtol=1e-4)

    # Default: bf16-streamed adjacency (dominant HBM stream halved); f32 accum
    # and f32 projection, so only adj itself is quantized.
    out_bf16 = jax.block_until_ready(sage_convolution(x, adj, weight))
    assert out_bf16.shape == (B, N, C_out)
    assert jnp.allclose(out_bf16, ref, atol=0.15, rtol=0.05)

    # K-tiled fallback path (rectangular adj tiles), ragged C_out.
    B2, N2, Ci2, Co2 = 1, 256, 32, 48
    k2x, k2a, k2w = jax.random.split(jax.random.PRNGKey(1), 3)
    b2 = 1.0 / math.sqrt(Ci2)
    w2 = jax.random.uniform(k2w, (Co2, Ci2), jnp.float32, -b2, b2)
    x2 = jax.random.normal(k2x, (B2 * N2, Ci2), jnp.float32)
    a2 = jax.random.normal(k2a, (B2, N2, N2), jnp.float32)
    out_kt = jax.block_until_ready(
        sage_convolution(x2, a2, w2, adj_dtype=None,
                         force_k_tiled=True, row_tile=128, k_tile=128))
    assert out_kt.shape == (B2, N2, Co2)
    assert jnp.allclose(out_kt, _reference(x2, a2, w2), atol=2e-3, rtol=2e-3)

    # Ragged N (zero-padded to a sublane multiple) + ragged C_out, fused path.
    B3, N3, Ci3, Co3 = 1, 20, 16, 40
    k3x, k3a, k3w = jax.random.split(jax.random.PRNGKey(2), 3)
    b3 = 1.0 / math.sqrt(Ci3)
    w3 = jax.random.uniform(k3w, (Co3, Ci3), jnp.float32, -b3, b3)
    x3 = jax.random.normal(k3x, (B3 * N3, Ci3), jnp.float32)
    a3 = jax.random.normal(k3a, (B3, N3, N3), jnp.float32)
    out_r = jax.block_until_ready(
        sage_convolution(x3, a3, w3, adj_dtype=None))
    assert out_r.shape == (B3, N3, Co3)
    assert jnp.allclose(out_r, _reference(x3, a3, w3), atol=1e-4, rtol=1e-4)

    print("KERNEL_OK")
</pallas_src>

<mosaic_0001>
module attributes {stable_mosaic.version = 11 : i64} {
  func.func @_sage_fused_kernel(%arg0: i32, %arg1: i32, %arg2: memref<1x16x32xf32, #tpu.memory_space<vmem>>, %arg3: memref<1x16x16xf32, #tpu.memory_space<vmem>>, %arg4: memref<32x128xf32, #tpu.memory_space<vmem>>, %arg5: memref<1x16x128xf32, #tpu.memory_space<vmem>>) attributes {dimension_semantics = [#tpu.dimension_semantics<parallel>, #tpu.dimension_semantics<parallel>], iteration_bounds = array<i64: 2, 1>, scalar_prefetch = 0 : i64, scratch_operands = 0 : i64, tpu.core_type = #tpu.core_type<tc>, window_params = [{transform_indices = @transform_0, window_bounds = array<i64: 1, 16, 32>}, {transform_indices = @transform_1, window_bounds = array<i64: 1, 16, 16>}, {pipeline_mode = #tpu.pipeline_mode<synchronous>, transform_indices = @transform_2, window_bounds = array<i64: 32, 128>}, {transform_indices = @transform_3, window_bounds = array<i64: 1, 16, 128>}]} {
    %c0 = arith.constant 0 : index
    %c0_0 = arith.constant 0 : index
    %c0_1 = arith.constant 0 : index
    %0 = vector.load %arg2[%c0, %c0_0, %c0_1] : memref<1x16x32xf32, #tpu.memory_space<vmem>>, vector<1x16x32xf32>
    %1 = vector.shape_cast %0 : vector<1x16x32xf32> to vector<16x32xf32>
    %c0_2 = arith.constant 0 : index
    %c0_3 = arith.constant 0 : index
    %c0_4 = arith.constant 0 : index
    %2 = vector.load %arg3[%c0_2, %c0_3, %c0_4] : memref<1x16x16xf32, #tpu.memory_space<vmem>>, vector<1x16x16xf32>
    %3 = vector.shape_cast %2 : vector<1x16x16xf32> to vector<16x16xf32>
    %cst = arith.constant dense<0.000000e+00> : vector<16x32xf32>
    %4 = tpu.matmul %3, %1, %cst {dimension_numbers = #tpu.dot_dimension_numbers<[1], [0], [0], [1], [0, 0, 1, 1], [], []>} : vector<16x16xf32>, vector<16x32xf32>, vector<16x32xf32> -> vector<16x32xf32>
    %c16_i32 = arith.constant 16 : i32
    %5 = arith.muli %arg1, %c16_i32 : i32
    %6 = tpu.assume_multiple %5, 16 : i32
    %c0_5 = arith.constant 0 : index
    %7 = arith.index_cast %6 : i32 to index
    %c0_6 = arith.constant 0 : index
    %8 = vector.load %arg2[%c0_5, %7, %c0_6] : memref<1x16x32xf32, #tpu.memory_space<vmem>>, vector<1x16x32xf32>
    %9 = vector.shape_cast %8 : vector<1x16x32xf32> to vector<16x32xf32>
    %10 = arith.addf %4, %9 : vector<16x32xf32>
    %c0_7 = arith.constant 0 : index
    %c0_8 = arith.constant 0 : index
    %11 = vector.load %arg4[%c0_7, %c0_8] : memref<32x128xf32, #tpu.memory_space<vmem>>, vector<32x128xf32>
    %cst_9 = arith.constant dense<0.000000e+00> : vector<16x128xf32>
    %12 = tpu.matmul %10, %11, %cst_9 {dimension_numbers = #tpu.dot_dimension_numbers<[1], [0], [0], [1], [0, 0, 1, 1], [], []>} : vector<16x32xf32>, vector<32x128xf32>, vector<16x128xf32> -> vector<16x128xf32>
    %c0_10 = arith.constant 0 : index
    %c0_11 = arith.constant 0 : index
    %c0_12 = arith.constant 0 : index
    %13 = vector.load %arg5[%c0_10, %c0_11, %c0_12] : memref<1x16x128xf32, #tpu.memory_space<vmem>>, vector<1x16x128xf32>
    %14 = vector.shape_cast %13 : vector<1x16x128xf32> to vector<16x128xf32>
    %15 = vector.shape_cast %12 : vector<16x128xf32> to vector<1x16x128xf32>
    tpu.vector_store %arg5[%c0_10, %c0_11, %c0_12], %15 {strides = array<i32>} : memref<1x16x128xf32, #tpu.memory_space<vmem>>, vector<1x16x128xf32>,
    return
  }
  func.func @transform_0(%arg0: i32, %arg1: i32) -> (i32, i32, i32) {
    %c0_i32 = arith.constant 0 : i32
    %c0_i32_0 = arith.constant 0 : i32
    %c0_i32_1 = arith.constant 0 : i32
    return %arg0, %c0_i32, %c0_i32_0 : i32, i32, i32
  }
  func.func @transform_1(%arg0: i32, %arg1: i32) -> (i32, i32, i32) {
    %c0_i32 = arith.constant 0 : i32
    %c0_i32_0 = arith.constant 0 : i32
    return %arg0, %arg1, %c0_i32 : i32, i32, i32
  }
  func.func @transform_2(%arg0: i32, %arg1: i32) -> (i32, i32) {
    %c0_i32 = arith.constant 0 : i32
    %c0_i32_0 = arith.constant 0 : i32
    %c0_i32_1 = arith.constant 0 : i32
    return %c0_i32, %c0_i32_0 : i32, i32
  }
  func.func @transform_3(%arg0: i32, %arg1: i32) -> (i32, i32, i32) {
    %c0_i32 = arith.constant 0 : i32
    %c0_i32_0 = arith.constant 0 : i32
    return %arg0, %arg1, %c0_i32 : i32, i32, i32
  }
}

</mosaic_0001>

<llo_original>
// kernel: tpu_custom_call.1
$region0: #{tpu_custom_call.1}
  #allocation0 [shape = 'u32[]', space=smem, size = 0x4, offset = 0x4, fixed_abs, tag = 'smem constant byte address 0x4 - core index']
  #allocation1 [shape = 'u32[144,128]{1,0:T(1,128)}', space=vmem, size = 0x12000, scoped, tag = 'internal scratch']
  %s0 = inlined_call_operand.hbm [shape: f32[2,16,32], index: 0, kind: input, shape index: {}]
  %s1 = inlined_call_operand.hbm [shape: f32[2,16,16], index: 1, kind: input, shape index: {}]
  %s2 = inlined_call_operand.hbm [shape: f32[32,128], index: 2, kind: input, shape index: {}]
  %s3 = inlined_call_operand.hbm [shape: f32[2,16,128], index: 3, kind: output, shape index: {}]
  %s4 = sld [smem:[#allocation0]]
  $region57: #{tpu_custom_call.1} parent=0
    _
  %s6 = ssub.s32 1, %s4
  %s7 = scalar_select 0, %s6, %s4
  $region1: #{tpu_custom_call.1} parent=0
    #allocation2 [shape = 'u8[16384]{0}', space=vmem, size = 0x4000, scoped, tag = 'input window, operand 0']
    #allocation3 [shape = 's32[2]{0}', space=sflag, size = 0x8, scoped, tag = 'scoped memory for tpu_custom_call.1']
    #allocation4 [shape = 's32[2]{0}', space=sflag, size = 0x8, scoped, tag = 'scoped memory for tpu_custom_call.1']
    #allocation5 [shape = 'u8[16384]{0}', space=vmem, size = 0x4000, scoped, tag = 'input window, operand 1']
    #allocation6 [shape = 's32[2]{0}', space=sflag, size = 0x8, scoped, tag = 'scoped memory for tpu_custom_call.1']
    #allocation7 [shape = 'u8[16384]{0}', space=vmem, size = 0x4000, scoped, tag = 'input window, operand 2, single buffered']
    #allocation8 [shape = 'u8[16384]{0}', space=vmem, size = 0x4000, scoped, tag = 'output window, operand 0']
    %8 = vsyncpa [#allocation3], 0
    %s9 = scalar_lea.sflag [#allocation3], 1
    %10 = vsyncpa %s9, 0
    %11 = vsyncpa [#allocation6], 0
    %s12 = scalar_lea.sflag [#allocation6], 1
    %13 = vsyncpa %s12, 0
    %14 = vsyncpa [#allocation4], 0
    %s15 = scalar_lea.sflag [#allocation4], 1
    %16 = vsyncpa %s15, 0
    loop: start=0, step=1, limit=4
    $region2: #{tpu_custom_call.1} parent=1 // loop_pre_header
      _
    $region3: #{tpu_custom_call.1} parent=1 // loop_header
      %s18 = sphi 0, %s22
      %p19 = scmp.ge.s32.totalorder %s18, 4
      %s25 = sphi 0, %s37
      %s26 = sphi 0, %s33
      %s27 = sphi 0, %s25
      %s28 = sphi 0, %s26
      %s29 = sphi 0, %s27
      %s30 = sphi 0, %s28
      %s40 = sphi 0, %s42
      %s43 = sphi 0, %s40
      %s44 = sphi 0, %s43
      %s60 = sphi 0, %s44
      %s68 = sphi 0, %s70
      %s71 = sphi 0, %s68
      %s72 = sphi 0, %s71
      %s88 = sphi 0, %s72
      %s92 = sphi 0, %s92
      %s94 = sphi 0, %s92
      %s95 = sphi 0, %s94
      %s109 = sphi 0, %s95
      %s117 = sphi 0, %s119
      %s120 = sphi 0, %s117
      %s121 = sphi 0, %s120
      %s137 = sphi 0, %s121
    $region4: #{tpu_custom_call.1} parent=1 // loop_header_branch
      %21 = sbr.rel (%p19) target = $region8
    $region5: #{tpu_custom_call.1} parent=1 // loop_body
      %s23 = ssub.s32 %s18, 1
      %s24 = ssub.s32 %s18, 2
      %s31 = sadd.s32 1, %s26
      %p32 = scmp.ge.s32.totalorder %s31, 1
      %s33 = scalar_select %p32, 0, %s31
      %s34 = sadd.s32 1, %s25
      %s35 = scalar_select %p32, %s34, %s25
      %p36 = scmp.ge.s32.totalorder %s35, 2
      %s37 = scalar_select %p36, 0, %s35
      %s38 = ssub.s32 %s25, %s37
      %p39 = scmp.eq.s32.totalorder %s38, 0
      %s41 = sadd.s32 %s40, 1
      %s42 = scalar_select %p39, %s40, %s41
      %p45 = pneg %p39
      %p46 = scmp.eq.s32.totalorder %s18, 1
      %p47 = por %p45, %p46
      %p48 = scmp.ne.s32.totalorder %s40, %s43
      %p49 = scmp.eq.s32.totalorder %s18, 0
      %p50 = por %p48, %p49
      %p51 = scmp.ne.s32.totalorder %s40, %s43
      %p52 = scmp.eq.s32.totalorder %s23, 1
      %p53 = por %p51, %p52
      %p54 = scmp.ne.s32.totalorder %s43, %s44
      %p55 = scmp.eq.s32.totalorder %s23, 0
      %p56 = por %p54, %p55
      %p57 = scmp.ne.s32.totalorder %s43, %s44
      %p58 = scmp.eq.s32.totalorder %s24, 1
      %p59 = por %p57, %p58
      %p61 = scmp.ne.s32.totalorder %s44, %s60
      %p62 = scmp.eq.s32.totalorder %s24, 0
      %p63 = por %p61, %p62
      %s64 = ssub.s32 %s25, %s37
      %s65 = ssub.s32 %s26, %s33
      %s66 = sor.u32 %s64, %s65
      %p67 = scmp.eq.s32.totalorder %s66, 0
      %s69 = sadd.s32 %s68, 1
      %s70 = scalar_select %p67, %s68, %s69
      %p73 = pneg %p67
      %p74 = scmp.eq.s32.totalorder %s18, 1
      %p75 = por %p73, %p74
      %p76 = scmp.ne.s32.totalorder %s68, %s71
      %p77 = scmp.eq.s32.totalorder %s18, 0
      %p78 = por %p76, %p77
      %p79 = scmp.ne.s32.totalorder %s68, %s71
      %p80 = scmp.eq.s32.totalorder %s23, 1
      %p81 = por %p79, %p80
      %p82 = scmp.ne.s32.totalorder %s71, %s72
      %p83 = scmp.eq.s32.totalorder %s23, 0
      %p84 = por %p82, %p83
      %p85 = scmp.ne.s32.totalorder %s71, %s72
      %p86 = scmp.eq.s32.totalorder %s24, 1
      %p87 = por %p85, %p86
      %p89 = scmp.ne.s32.totalorder %s72, %s88
      %p90 = scmp.eq.s32.totalorder %s24, 0
      %p91 = por %p89, %p90
      %s93 = sadd.s32 %s92, 1
      %p96 = scmp.eq.s32.totalorder %s18, 1
      %p97 = scmp.ne.s32.totalorder %s92, %s94
      %p98 = scmp.eq.s32.totalorder %s18, 0
      %p99 = por %p97, %p98
      %p100 = scmp.ne.s32.totalorder %s92, %s94
      %p101 = scmp.eq.s32.totalorder %s23, 1
      %p102 = por %p100, %p101
      %p103 = scmp.ne.s32.totalorder %s94, %s95
      %p104 = scmp.eq.s32.totalorder %s23, 0
      %p105 = por %p103, %p104
      %p106 = scmp.ne.s32.totalorder %s94, %s95
      %p107 = scmp.eq.s32.totalorder %s24, 1
      %p108 = por %p106, %p107
      %p110 = scmp.ne.s32.totalorder %s95, %s109
      %p111 = scmp.eq.s32.totalorder %s24, 0
      %p112 = por %p110, %p111
      %s113 = ssub.s32 %s25, %s37
      %s114 = ssub.s32 %s26, %s33
      %s115 = sor.u32 %s113, %s114
      %p116 = scmp.eq.s32.totalorder %s115, 0
      %s118 = sadd.s32 %s117, 1
      %s119 = scalar_select %p116, %s117, %s118
      %p122 = pneg %p116
      %p123 = scmp.eq.s32.totalorder %s18, 1
      %p124 = por %p122, %p123
      %p125 = scmp.ne.s32.totalorder %s117, %s120
      %p126 = scmp.eq.s32.totalorder %s18, 0
      %p127 = por %p125, %p126
      %p128 = scmp.ne.s32.totalorder %s117, %s120
      %p129 = scmp.eq.s32.totalorder %s23, 1
      %p130 = por %p128, %p129
      %p131 = scmp.ne.s32.totalorder %s120, %s121
      %p132 = scmp.eq.s32.totalorder %s23, 0
      %p133 = por %p131, %p132
      %p134 = scmp.ne.s32.totalorder %s120, %s121
      %p135 = scmp.eq.s32.totalorder %s24, 1
      %p136 = por %p134, %p135
      %p138 = scmp.ne.s32.totalorder %s121, %s137
      %p139 = scmp.eq.s32.totalorder %s24, 0
      %p140 = por %p138, %p139
      %p141 = scmp.le.s32.totalorder 1, %s18
      %p142 = scmp.lt.s32.totalorder %s18, 3
      %p143 = pnand %p141, %p142
      %p144 = pneg %p143
      // Predicated region
      $region9: #{tpu_custom_call.1} parent=5 // pred_check
        _
      $region10: #{tpu_custom_call.1} parent=5 // pred_check_branch
        %146 = sbr.rel (%p143) target = $region12
      $region11: #{tpu_custom_call.1} parent=5 // pred_region
        %s147 = ssub.s32 %s18, 1
        // Predicated region
        $region13: #{tpu_custom_call.1} parent=11 // pred_check
          %p148 = pneg %p105
        $region14: #{tpu_custom_call.1} parent=11 // pred_check_branch
          %150 = sbr.rel (%p148) target = $region16
        $region15: #{tpu_custom_call.1} parent=11 // pred_region
          %s152 = ssub.s32 512, 512
          %153 = vsyncadd [#allocation6], %s152
          %s154 = sshll.u32 [#allocation7], 4
          %s155 = int_to_ptr.vmem [resolvable:$true] %s154
          %160 = dma.hbm_to_vmem [thread:$0]  %s2, 512, %s155, [#allocation6], 128, 128, 8
        $region16: #{tpu_custom_call.1} parent=11 // pred_fallthru
          _
      $region12: #{tpu_custom_call.1} parent=5 // pred_fallthru
        _
      %p161 = scmp.lt.s32.totalorder %s18, 2
      // Predicated region
      $region17: #{tpu_custom_call.1} parent=5 // pred_check
        %p162 = pneg %p161
      $region18: #{tpu_custom_call.1} parent=5 // pred_check_branch
        %164 = sbr.rel (%p162) target = $region20
      $region19: #{tpu_custom_call.1} parent=5 // pred_region
        // Predicated region
        $region21: #{tpu_custom_call.1} parent=19 // pred_check
          %p165 = pneg %p50
        $region22: #{tpu_custom_call.1} parent=19 // pred_check_branch
          %167 = sbr.rel (%p165) target = $region24
        $region23: #{tpu_custom_call.1} parent=19 // pred_region
          %s168 = sand.u32 %s40, 1
          %s169 = scalar_lea.sflag [#allocation3], %s168
          %s170 = sand.u32 %s40, 1
          %s171 = smul.addr %s170, 16
          %s172 = scalar_lea.vmem [#allocation2], %s171
          %s174 = ssub.s32 256, 256
          %175 = vsyncadd %s169, %s174
          %s176 = smul.addr %s25, 2
          %s177 = smul.addr %s176, 128
          %s178 = scalar_lea.hbm %s0, %s177
          %s179 = sshll.u32 %s172, 4
          %s180 = int_to_ptr.vmem [resolvable:$true] %s179
          %185 = dma.hbm_to_vmem [thread:$0]  %s178, 256, %s180, %s169, 128, 128, 8
        $region24: #{tpu_custom_call.1} parent=19 // pred_fallthru
          _
        // Predicated region
        $region25: #{tpu_custom_call.1} parent=19 // pred_check
          %p186 = pneg %p78
        $region26: #{tpu_custom_call.1} parent=19 // pred_check_branch
          %188 = sbr.rel (%p186) target = $region28
        $region27: #{tpu_custom_call.1} parent=19 // pred_region
          %s189 = sand.u32 %s18, 1
          %s190 = scalar_lea.sflag [#allocation6], %s189
          %s191 = sand.u32 %s68, 1
          %s192 = smul.addr %s191, 16
          %s193 = scalar_lea.vmem [#allocation5], %s192
          %s194 = smul.u32 2, %s26
          %s196 = ssub.s32 256, 256
          %197 = vsyncadd %s190, %s196
          %s198 = smul.addr %s25, 2
          %s199 = sadd.s32 %s194, %s198
          %s200 = smul.addr %s199, 128
          %s201 = scalar_lea.hbm %s1, %s200
          %s202 = sshll.u32 %s193, 4
          %s203 = int_to_ptr.vmem [resolvable:$true] %s202
          %208 = dma.hbm_to_vmem [thread:$0]  %s201, 256, %s203, %s190, 128, 128, 8
        $region28: #{tpu_custom_call.1} parent=19 // pred_fallthru
          _
      $region20: #{tpu_custom_call.1} parent=5 // pred_fallthru
        _
      %p209 = scmp.le.s32.totalorder 1, %s18
      %p210 = scmp.lt.s32.totalorder %s18, 3
      %p211 = pnand %p209, %p210
      %p212 = pneg %p211
      // Predicated region
      $region29: #{tpu_custom_call.1} parent=5 // pred_check
        _
      $region30: #{tpu_custom_call.1} parent=5 // pred_check_branch
        %214 = sbr.rel (%p211) target = $region32
      $region31: #{tpu_custom_call.1} parent=5 // pred_region
        %s215 = ssub.s32 %s18, 1
        %s216 = sand.u32 %s43, 1
        %s217 = scalar_lea.sflag [#allocation3], %s216
        %s218 = sand.u32 %s43, 1
        %s219 = smul.addr %s218, 16
        %s220 = scalar_lea.vmem [#allocation2], %s219
        // Predicated region
        $region33: #{tpu_custom_call.1} parent=31 // pred_check
          %p221 = pneg %p56
        $region34: #{tpu_custom_call.1} parent=31 // pred_check_branch
          %223 = sbr.rel (%p221) target = $region36
        $region35: #{tpu_custom_call.1} parent=31 // pred_region
          %224 = dma.done %s217, 256
        $region36: #{tpu_custom_call.1} parent=31 // pred_fallthru
          _
        %s225 = sand.u32 %s23, 1
        %s226 = scalar_lea.sflag [#allocation6], %s225
        %s227 = sand.u32 %s71, 1
        %s228 = smul.addr %s227, 16
        %s229 = scalar_lea.vmem [#allocation5], %s228
        // Predicated region
        $region37: #{tpu_custom_call.1} parent=31 // pred_check
          %p230 = pneg %p84
        $region38: #{tpu_custom_call.1} parent=31 // pred_check_branch
          %232 = sbr.rel (%p230) target = $region40
        $region39: #{tpu_custom_call.1} parent=31 // pred_region
          %233 = dma.done %s226, 256
        $region40: #{tpu_custom_call.1} parent=31 // pred_fallthru
          _
        // Predicated region
        $region41: #{tpu_custom_call.1} parent=31 // pred_check
          %p234 = pneg %p105
        $region42: #{tpu_custom_call.1} parent=31 // pred_check_branch
          %236 = sbr.rel (%p234) target = $region44
        $region43: #{tpu_custom_call.1} parent=31 // pred_region
          %237 = dma.done [#allocation6], 512
        $region44: #{tpu_custom_call.1} parent=31 // pred_fallthru
          _
        %s238 = sand.u32 %s43, 1
        %s239 = scalar_lea.sflag [#allocation3], %s238
        %s240 = sand.u32 %s43, 1
        %s241 = smul.addr %s240, 16
        %s242 = scalar_lea.vmem [#allocation2], %s241
        %p243 = pneg %p56
        %p244 = pneg %p53
        %s245 = sand.u32 %s23, 1
        %s246 = scalar_lea.sflag [#allocation6], %s245
        %s247 = sand.u32 %s71, 1
        %s248 = smul.addr %s247, 16
        %s249 = scalar_lea.vmem [#allocation5], %s248
        %p250 = pneg %p84
        %p251 = pneg %p81
        %p252 = pneg %p105
        %p253 = pneg %p102
        %p254 = pneg %p133
        %p255 = pneg %p130
        %s256 = sand.u32 %s120, 1
        %s257 = scalar_lea.sflag [#allocation4], %s256
        %s258 = sand.u32 %s120, 1
        %s259 = smul.addr %s258, 16
        %s260 = scalar_lea.vmem [#allocation8], %s259
        %s261 = smul.u32 2, %s28
        %s262 = smul.u32 2, %s28
        %v263 = vld [vmem:[%s220] sm:$0xff]
        %v264 = vld [vmem:[%s220 + $0x8] sm:$0xff]
        %v265 = vld [vmem:[%s229] sm:$0xff]
        %v266 = vld [vmem:[%s229 + $0x8] sm:$0xff]
        %s267 = smul.u32 %s28, 16
        %s268 = scalar_lea.vmem %s220, %s267 [#allocation2]
        %v269 = vld [vmem:[%s268] sm:$0xff]
        %v270 = vld [vmem:[%s268 + $0x8] sm:$0xff]
        %vm271 = vcmask 130048
        %v273 = vsel %vm271, %v265, 0
        %v276 = vsel %vm271, %v266, 0
        %278 = vmatprep.subr.mxu0 0.0
        %279 = vmatpush1.msra.mxu0 %v263
        %280 = vmatprep.subr.mxu0 0.0
        %281 = vmatpush1.msra.mxu0 %v264
        %282 = vmatprep.subr.mxu0 0.0
        %283 = vmatpush1.msra.mxu0 0.0
        %284 = vmatprep.subr.mxu0 0.0
        %285 = vmatpush1.msra.mxu0 0.0
        %286 = vmatprep.subr.mxu0 0.0
        %287 = vmatpush1.msra.mxu0 0.0
        %288 = vmatprep.subr.mxu0 0.0
        %289 = vmatpush1.msra.mxu0 0.0
        %290 = vmatprep.subr.mxu0 0.0
        %291 = vmatpush1.msra.mxu0 0.0
        %292 = vmatprep.subr.mxu0 0.0
        %293 = vmatpush1.msra.mxu0 0.0
        %294 = vmatprep.subr.mxu0 0.0
        %295 = vmatpush1.msra.mxu0 0.0
        %296 = vmatprep.subr.mxu0 0.0
        %297 = vmatpush1.msra.mxu0 0.0
        %298 = vmatprep.subr.mxu0 0.0
        %299 = vmatpush1.msra.mxu0 0.0
        %300 = vmatprep.subr.mxu0 0.0
        %301 = vmatpush1.msra.mxu0 0.0
        %302 = vmatprep.subr.mxu0 0.0
        %303 = vmatpush1.msra.mxu0 0.0
        %304 = vmatprep.subr.mxu0 0.0
        %305 = vmatpush1.msra.mxu0 0.0
        %306 = vmatprep.subr.mxu0 0.0
        %307 = vmatpush1.msra.mxu0 0.0
        %308 = vmatprep.subr.mxu0 0.0
        %309 = vmatpush1.msra.mxu0 0.0
        %310 = vmatprep.subr.mxu0 0.0
        %311 = vmatpush1.msra.mxu0 0.0
        %312 = vmatprep.subr.mxu0 0.0
        %313 = vmatpush1.msra.mxu0 0.0
        %314 = vmatprep.subr.mxu0 0.0
        %315 = vmatpush1.msra.mxu0 0.0
        %316 = vmatprep.subr.mxu0 0.0
        %317 = vmatpush1.msra.mxu0 0.0
        %318 = vmatprep.subr.mxu0 0.0
        %319 = vmatpush1.msra.mxu0 0.0
        %320 = vmatprep.subr.mxu0 0.0
        %321 = vmatpush1.msra.mxu0 0.0
        %322 = vmatprep.subr.mxu0 0.0
        %323 = vmatpush1.msra.mxu0 0.0
        %324 = vmatprep.subr.mxu0 0.0
        %325 = vmatpush1.msra.mxu0 0.0
        %326 = vmatprep.subr.mxu0 0.0
        %327 = vmatpush1.msra.mxu0 0.0
        %328 = vmatprep.subr.mxu0 0.0
        %329 = vmatpush1.msra.mxu0 0.0
        %330 = vmatprep.subr.mxu0 0.0
        %331 = vmatpush1.msra.mxu0 0.0
        %332 = vmatprep.subr.mxu0 0.0
        %333 = vmatpush1.msra.mxu0 0.0
        %334 = vmatprep.subr.mxu0 0.0
        %335 = vmatpush1.msra.mxu0 0.0
        %336 = vmatprep.subr.mxu0 0.0
        %337 = vmatpush1.msra.mxu0 0.0
        %338 = vmatprep.subr.mxu0 0.0
        %339 = vmatpush1.msra.mxu0 0.0
        %340 = vmatprep.subr.mxu0 0.0
        %341 = vmatpush1.msra.mxu0 0.0
        %342 = vmatprep.mubr.f32.mxu0 0.0
        %343 = vmatmul.mubr.f32.gmra.mrb[0].mxu0 %v273
        %v344 = vpop.f32.mrb[0].mxu0
        %v345 = vadd.f32 %v269, %v344
        %v346 = vpop.f32.mrb[0].mxu0
        %347 = vmatprep.mubr.f32.mxu0 0.0
        %348 = vmatmul.mubr.f32.gmra.mrb[0].mxu0 %v276
        %v349 = vpop.f32.mrb[0].mxu0
        %v350 = vadd.f32 %v270, %v349
        %v351 = vpop.f32.mrb[0].mxu0
        %352 = vdwg.mxu0
        %v353 = vld [vmem:[#allocation7] sm:$0xff]
        %v354 = vld [vmem:[#allocation7 + $0x8] sm:$0xff]
        %v355 = vld [vmem:[#allocation7 + $0x10] sm:$0xff]
        %v356 = vld [vmem:[#allocation7 + $0x18] sm:$0xff]
        %vm357 = vcmask 261120
        %v359 = vsel %vm357, %v345, 0
        %v362 = vsel %vm357, %v350, 0
        %364 = vmatprep.subr.mxu0 0.0
        %365 = vmatpush1.msra.mxu0 %v353
        %366 = vmatprep.subr.mxu0 0.0
        %367 = vmatpush1.msra.mxu0 %v354
        %368 = vmatprep.subr.mxu0 0.0
        %369 = vmatpush1.msra.mxu0 %v355
        %370 = vmatprep.subr.mxu0 0.0
        %371 = vmatpush1.msra.mxu0 %v356
        %372 = vmatprep.subr.mxu0 0.0
        %373 = vmatpush1.msra.mxu0 0.0
        %374 = vmatprep.subr.mxu0 0.0
        %375 = vmatpush1.msra.mxu0 0.0
        %376 = vmatprep.subr.mxu0 0.0
        %377 = vmatpush1.msra.mxu0 0.0
        %378 = vmatprep.subr.mxu0 0.0
        %379 = vmatpush1.msra.mxu0 0.0
        %380 = vmatprep.subr.mxu0 0.0
        %381 = vmatpush1.msra.mxu0 0.0
        %382 = vmatprep.subr.mxu0 0.0
        %383 = vmatpush1.msra.mxu0 0.0
        %384 = vmatprep.subr.mxu0 0.0
        %385 = vmatpush1.msra.mxu0 0.0
        %386 = vmatprep.subr.mxu0 0.0
        %387 = vmatpush1.msra.mxu0 0.0
        %388 = vmatprep.subr.mxu0 0.0
        %389 = vmatpush1.msra.mxu0 0.0
        %390 = vmatprep.subr.mxu0 0.0
        %391 = vmatpush1.msra.mxu0 0.0
        %392 = vmatprep.subr.mxu0 0.0
        %393 = vmatpush1.msra.mxu0 0.0
        %394 = vmatprep.subr.mxu0 0.0
        %395 = vmatpush1.msra.mxu0 0.0
        %396 = vmatprep.subr.mxu0 0.0
        %397 = vmatpush1.msra.mxu0 0.0
        %398 = vmatprep.subr.mxu0 0.0
        %399 = vmatpush1.msra.mxu0 0.0
        %400 = vmatprep.subr.mxu0 0.0
        %401 = vmatpush1.msra.mxu0 0.0
        %402 = vmatprep.subr.mxu0 0.0
        %403 = vmatpush1.msra.mxu0 0.0
        %404 = vmatprep.subr.mxu0 0.0
        %405 = vmatpush1.msra.mxu0 0.0
        %406 = vmatprep.subr.mxu0 0.0
        %407 = vmatpush1.msra.mxu0 0.0
        %408 = vmatprep.subr.mxu0 0.0
        %409 = vmatpush1.msra.mxu0 0.0
        %410 = vmatprep.subr.mxu0 0.0
        %411 = vmatpush1.msra.mxu0 0.0
        %412 = vmatprep.subr.mxu0 0.0
        %413 = vmatpush1.msra.mxu0 0.0
        %414 = vmatprep.subr.mxu0 0.0
        %415 = vmatpush1.msra.mxu0 0.0
        %416 = vmatprep.subr.mxu0 0.0
        %417 = vmatpush1.msra.mxu0 0.0
        %418 = vmatprep.subr.mxu0 0.0
        %419 = vmatpush1.msra.mxu0 0.0
        %420 = vmatprep.subr.mxu0 0.0
        %421 = vmatpush1.msra.mxu0 0.0
        %422 = vmatprep.subr.mxu0 0.0
        %423 = vmatpush1.msra.mxu0 0.0
        %424 = vmatprep.subr.mxu0 0.0
        %425 = vmatpush1.msra.mxu0 0.0
        %426 = vmatprep.subr.mxu0 0.0
        %427 = vmatpush1.msra.mxu0 0.0
        %428 = vmatprep.mubr.f32.mxu0 0.0
        %429 = vmatmul.mubr.f32.gmra.mrb[0].mxu0 %v359
        %v430 = vpop.f32.mrb[0].mxu0
        %v431 = vadd.f32 0.0, %v430
        %v432 = vpop.f32.mrb[0].mxu0
        %433 = vmatprep.mubr.f32.mxu0 0.0
        %434 = vmatmul.mubr.f32.gmra.mrb[0].mxu0 %v362
        %v435 = vpop.f32.mrb[0].mxu0
        %v436 = vadd.f32 0.0, %v435
        %v437 = vpop.f32.mrb[0].mxu0
        %438 = vdwg.mxu0
        %439 = vst [vmem:[%s260] sm:$0xff] %v431
        %440 = vst [vmem:[%s260 + $0x8] sm:$0xff] %v436
        %s441 = sand.u32 %s120, 1
        %s442 = scalar_lea.sflag [#allocation4], %s441
        %s443 = sand.u32 %s120, 1
        %s444 = smul.addr %s443, 16
        %s445 = scalar_lea.vmem [#allocation8], %s444
        // Predicated region
        $region45: #{tpu_custom_call.1} parent=31 // pred_check
          %p446 = pneg %p130
        $region46: #{tpu_custom_call.1} parent=31 // pred_check_branch
          %448 = sbr.rel (%p446) target = $region48
        $region47: #{tpu_custom_call.1} parent=31 // pred_region
          %s449 = smul.u32 2, %s28
          %s451 = ssub.s32 256, 256
          %452 = vsyncadd %s442, %s451
          %s453 = smul.addr %s27, 2
          %s454 = sadd.s32 %s449, %s453
          %s455 = smul.addr %s454, 128
          %s456 = scalar_lea.hbm %s3, %s455
          %s457 = sshll.u32 %s445, 4
          %s458 = int_to_ptr.vmem [resolvable:$true] %s457
          %463 = dma.vmem_to_hbm [thread:$0]  %s458, 256, %s456, %s442, 128, 128, 8
        $region48: #{tpu_custom_call.1} parent=31 // pred_fallthru
          _
      $region32: #{tpu_custom_call.1} parent=5 // pred_fallthru
        _
      %p464 = scmp.le.s32.totalorder 2, %s18
      // Predicated region
      $region49: #{tpu_custom_call.1} parent=5 // pred_check
        %p465 = pneg %p464
      $region50: #{tpu_custom_call.1} parent=5 // pred_check_branch
        %467 = sbr.rel (%p465) target = $region52
      $region51: #{tpu_custom_call.1} parent=5 // pred_region
        %s468 = ssub.s32 %s18, 2
        // Predicated region
        $region53: #{tpu_custom_call.1} parent=51 // pred_check
          %p469 = pneg %p136
        $region54: #{tpu_custom_call.1} parent=51 // pred_check_branch
          %471 = sbr.rel (%p469) target = $region56
        $region55: #{tpu_custom_call.1} parent=51 // pred_region
          %s472 = sand.u32 %s121, 1
          %s473 = scalar_lea.sflag [#allocation4], %s472
          %s474 = sand.u32 %s121, 1
          %s475 = smul.addr %s474, 16
          %s476 = scalar_lea.vmem [#allocation8], %s475
          %477 = dma.done %s473, 256
        $region56: #{tpu_custom_call.1} parent=51 // pred_fallthru
          _
      $region52: #{tpu_custom_call.1} parent=5 // pred_fallthru
        _
    $region6: #{tpu_custom_call.1} parent=1 // loop_footer
      %s22 = sadd.s32 1, %s18
    $region7: #{tpu_custom_call.1} parent=1 // loop_footer_branch
      %17 = sbr.rel target = $region3
    $region8: #{tpu_custom_call.1} parent=1 // loop_exit
      _
    %478 = vsyncpa [#allocation3], 1
    %s479 = scalar_lea.sflag [#allocation3], 1
    %480 = vsyncpa %s479, 1
    %481 = vsyncpa [#allocation6], 1
    %s482 = scalar_lea.sflag [#allocation6], 1
    %483 = vsyncpa %s482, 1
    %484 = vsyncpa [#allocation4], 1
    %s485 = scalar_lea.sflag [#allocation4], 1
    %486 = vsyncpa %s485, 1

</llo_original>
